<compile_context>
chip_gen: v6e
topology: v6e:2x2x1
jax: 0.10.0
libtpu: 0.0.40
codegen_flags: <defaults>
</compile_context>

<pallas_src>
import functools

import jax
import jax.numpy as jnp
from jax.experimental import pallas as pl
from jax.experimental.pallas import tpu as pltpu


# --------------------------- small helpers --------------------------------- #

def _round_up(x, m):
    return (x + m - 1) // m * m


def _pow2_floor(x, lo=128):
    """Largest power of two p with lo <= p <= max(x, lo)."""
    p = lo
    while p * 2 <= x:
        p *= 2
    return p


def _vmem_limit_bytes():
    """Generation-aware scoped-VMEM limit (~75% of physical VMEM)."""
    cap = 64 * 1024 * 1024            # conservative (v7x) fallback
    try:
        info = pltpu.get_tpu_info()
        cap = int(getattr(info, "vmem_capacity_bytes", cap)) or cap
    except Exception:
        pass
    return max(32 * 1024 * 1024, (cap * 3) // 4)


def _proj_tile(n, block_rows):
    """Row tile for the projection-only (initial=True) path."""
    if n < 256:
        return _round_up(n, 8)        # tiny graph: single small block
    # Keep >= 2 grid steps on the parallel axis (v7x has 2 TensorCores).
    return min(_pow2_floor(block_rows), _pow2_floor(max(128, n // 2)))


def _agg_tiles(n, block_rows, block_k, c, vmem_limit):
    """Power-of-two (>=128, lane-dense) tiles for the aggregation kernel that
    fit comfortably in VMEM, plus the adjacency pipeline depth."""
    n_cap = _pow2_floor(max(128, _round_up(n, 128)))
    tk = min(_pow2_floor(max(128, block_k)), n_cap)
    row_cap = _pow2_floor(max(128, _round_up(n, 128) // 2)) if n >= 256 else 128
    tm = min(_pow2_floor(max(128, block_rows)), row_cap)

    def fits(tm_, tk_, adj_bufs):
        adj = 2 * adj_bufs * tm_ * tk_ * 4        # two f32 adjacency streams
        sbuf = 2 * tk_ * c * 4                    # staged activations (f32)
        obuf = 2 * tm_ * c * 4                    # output blocks
        acc = tm_ * c * 4                         # accumulator scratch
        return adj + sbuf + obuf + acc <= int(vmem_limit * 0.7)

    while tk > 128 and not fits(tm, tk, 2):
        tk //= 2
    while tm > 128 and not fits(tm, tk, 2):
        tm //= 2
    adj_bufs = 3 if fits(tm, tk, 3) else 2
    return tm, tk, adj_bufs


def _adj_block_spec(tm, tk, bufs):
    """Adjacency BlockSpec; requests 3-deep buffering when supported + sized."""
    idx = lambda i, k: (i, k)
    if bufs > 2 and hasattr(pl, "Buffered"):
        try:
            return pl.BlockSpec((tm, tk), idx, pipeline_mode=pl.Buffered(bufs))
        except TypeError:
            pass
    return pl.BlockSpec((tm, tk), idx)


def _pad_rows(x, n_pad):
    n = x.shape[0]
    return x if n_pad == n else jnp.pad(x, ((0, n_pad - n), (0, 0)))


def _pad_square(a, n_pad):
    n = a.shape[0]
    return a if n_pad == n else jnp.pad(a, ((0, n_pad - n), (0, n_pad - n)))


def _elu(x):
    # ELU(alpha=1); exp only sees a clamped argument (no transient +inf).
    return jnp.where(x > 0, x, jnp.exp(jnp.minimum(x, 0.0)) - 1.0)


# ------------------------------ kernels ------------------------------------ #

def _proj_initial_kernel(x_ref, w_ref, b_ref, out_ref, *, half):
    """initial=True: z = x @ [Wm|Wv] + [bm|bv]; elu on mean half, relu on var."""
    x = x_ref[...].astype(jnp.bfloat16)            # per-block cast (no HBM pass)
    z = jnp.dot(x, w_ref[...], preferred_element_type=jnp.float32) + b_ref[...]
    col = jax.lax.broadcasted_iota(jnp.int32, z.shape, dimension=1)
    is_mean = col < half
    out_ref[...] = jnp.where(is_mean, _elu(z), jnp.maximum(z, 0.0))


def _proj_attention_kernel(mean_ref, var_ref, wm_ref, wv_ref, b_ref, out_ref,
                           *, half):
    """initial=False projection + robust-GCN attention, staged once."""
    zm = jnp.dot(mean_ref[...].astype(jnp.bfloat16), wm_ref[...],
                 preferred_element_type=jnp.float32)
    zv = jnp.dot(var_ref[...].astype(jnp.bfloat16), wv_ref[...],
                 preferred_element_type=jnp.float32)
    z = zm + zv + b_ref[...]
    col = jax.lax.broadcasted_iota(jnp.int32, z.shape, dimension=1)
    is_mean = col < half
    act = jnp.where(is_mean, _elu(z), jnp.maximum(z, 0.0))
    # mean column j needs var column j + half: a lane roll by `half` (XLU slot,
    # essentially free) aligns them with no sub-128-lane slicing.
    rolled = pltpu.roll(act, shift=half, axis=1)
    v = jnp.where(is_mean, rolled, act) + 1e-6
    att = jnp.exp(-v)                               # one EUP transcendental
    out_ref[...] = jnp.where(is_mean, act * att, v * att * att)


def _aggregate_kernel(adj0_ref, adj1_ref, s_ref, out_ref, acc_ref, *, half):
    """Accumulating [adj0 @ m | adj1 @ v] over the reduction (k) grid axis.
    Same rhs for both matmuls; masking happens on the (small) results."""
    k = pl.program_id(1)

    @pl.when(k == 0)
    def _():
        acc_ref[...] = jnp.zeros_like(acc_ref)

    s = s_ref[...]                                   # [TK, C] f32, reused
    t0 = jnp.dot(adj0_ref[...], s, preferred_element_type=jnp.float32)
    t1 = jnp.dot(adj1_ref[...], s, preferred_element_type=jnp.float32)
    col = jax.lax.broadcasted_iota(jnp.int32, t0.shape, dimension=1)
    acc_ref[...] += jnp.where(col < half, t0, t1)

    @pl.when(k == pl.num_programs(1) - 1)
    def _():
        out_ref[...] = acc_ref[...]


# ------------------------- params preparation ------------------------------ #

def prepare_robust_gcn_params(wm, bm, wv, bv):
    """One-time build of the fused, lane-padded weight/bias slabs.

    wm, wv: [in_dim, out_dim] (Linear weights pre-transposed), bm, bv: [out_dim].
    Mean occupies columns [0, out_dim); var occupies [half, half + out_dim),
    where half = round_up(out_dim, 64) so the slab width 2*half is lane-dense.
    """
    d, o = wm.shape
    half = _round_up(o, 64)
    c = 2 * half
    wm_slab = jnp.zeros((d, c), jnp.float32).at[:, :o].set(wm)
    wv_slab = jnp.zeros((d, c), jnp.float32).at[:, half:half + o].set(wv)
    b_slab = (jnp.zeros((1, c), jnp.float32)
              .at[:, :o].set(jnp.reshape(bm, (1, o)))
              .at[:, half:half + o].set(jnp.reshape(bv, (1, o))))
    prep = {
        "w_cat": (wm_slab + wv_slab).astype(jnp.bfloat16),   # initial=True slab
        "wm_slab": wm_slab.astype(jnp.bfloat16),
        "wv_slab": wv_slab.astype(jnp.bfloat16),
        "b_slab": b_slab,
    }
    return prep, o


# ------------------------------ forward ------------------------------------ #

@functools.partial(jax.jit,
                   static_argnames=("out_dim", "initial", "block_rows", "block_k"))
def _forward(prep, mean, var, adj0, adj1, *, out_dim, initial,
             block_rows, block_k):
    n, d = mean.shape
    c = prep["wm_slab"].shape[1]
    half = c // 2
    vmem_limit = _vmem_limit_bytes()
    compiler_1d = pltpu.CompilerParams(dimension_semantics=("parallel",),
                                       vmem_limit_bytes=vmem_limit)

    # TODO(synk): eval-mode dropout is the identity; training-mode dropout
    # (pltpu.prng_random_bits + mask) not implemented.

    if initial:
        tm = _proj_tile(n, block_rows)
        n_pad = _round_up(n, tm)
        x = _pad_rows(mean.astype(jnp.float32), n_pad)
        cost = pl.CostEstimate(
            flops=2 * n_pad * d * c, transcendentals=n_pad * c,
            bytes_accessed=n_pad * d * 4 + d * c * 2 + c * 4 + n_pad * c * 4)
        s = pl.pallas_call(
            functools.partial(_proj_initial_kernel, half=half),
            out_shape=jax.ShapeDtypeStruct((n_pad, c), jnp.float32),
            grid_spec=pltpu.PrefetchScalarGridSpec(
                num_scalar_prefetch=0,
                grid=(n_pad // tm,),
                in_specs=[
                    pl.BlockSpec((tm, d), lambda i: (i, 0)),
                    pl.BlockSpec((d, c), lambda i: (0, 0)),   # weights resident
                    pl.BlockSpec((1, c), lambda i: (0, 0)),   # bias resident
                ],
                out_specs=pl.BlockSpec((tm, c), lambda i: (i, 0)),
            ),
            compiler_params=compiler_1d,
            cost_estimate=cost,
        )(x, prep["w_cat"], prep["b_slab"])
        return s[:n, :out_dim], s[:n, half:half + out_dim]

    # ---------------- initial=False: project+attention, then aggregate ----- #
    tm, tk, adj_bufs = _agg_tiles(n, block_rows, block_k, c, vmem_limit)
    n_pad = _round_up(n, max(tm, tk))

    mean_p = _pad_rows(mean.astype(jnp.float32), n_pad)
    var_p = _pad_rows(var.astype(jnp.float32), n_pad)
    adj0_p = _pad_square(adj0.astype(jnp.float32), n_pad)   # f32, no bf16 pass
    adj1_p = _pad_square(adj1.astype(jnp.float32), n_pad)

    proj_cost = pl.CostEstimate(
        flops=4 * n_pad * d * c, transcendentals=2 * n_pad * c,
        bytes_accessed=2 * n_pad * d * 4 + 2 * d * c * 2 + c * 4 + n_pad * c * 4)
    s = pl.pallas_call(
        functools.partial(_proj_attention_kernel, half=half),
        out_shape=jax.ShapeDtypeStruct((n_pad, c), jnp.float32),
        grid_spec=pltpu.PrefetchScalarGridSpec(
            num_scalar_prefetch=0,
            grid=(n_pad // tm,),
            in_specs=[
                pl.BlockSpec((tm, d), lambda i: (i, 0)),
                pl.BlockSpec((tm, d), lambda i: (i, 0)),
                pl.BlockSpec((d, c), lambda i: (0, 0)),       # Wm slab resident
                pl.BlockSpec((d, c), lambda i: (0, 0)),       # Wv slab resident
                pl.BlockSpec((1, c), lambda i: (0, 0)),       # bias resident
            ],
            out_specs=pl.BlockSpec((tm, c), lambda i: (i, 0)),
        ),
        compiler_params=compiler_1d,
        cost_estimate=proj_cost,
    )(mean_p, var_p, prep["wm_slab"], prep["wv_slab"], prep["b_slab"])

    agg_cost = pl.CostEstimate(
        flops=4 * n_pad * n_pad * c, transcendentals=0,
        bytes_accessed=2 * n_pad * n_pad * 4 + n_pad * c * 4 + n_pad * c * 4)
    out = pl.pallas_call(
        functools.partial(_aggregate_kernel, half=half),
        out_shape=jax.ShapeDtypeStruct((n_pad, c), jnp.float32),
        grid_spec=pltpu.PrefetchScalarGridSpec(
            num_scalar_prefetch=0,
            grid=(n_pad // tm, n_pad // tk),
            in_specs=[
                _adj_block_spec(tm, tk, adj_bufs),
                _adj_block_spec(tm, tk, adj_bufs),
                pl.BlockSpec((tk, c), lambda i, k: (k, 0)),
            ],
            out_specs=pl.BlockSpec((tm, c), lambda i, k: (i, 0)),
            scratch_shapes=[pltpu.VMEM((tm, c), jnp.float32)],
        ),
        compiler_params=pltpu.CompilerParams(
            dimension_semantics=("parallel", "arbitrary"),
            vmem_limit_bytes=vmem_limit),
        cost_estimate=agg_cost,
    )(adj0_p, adj1_p, s)

    return out[:n, :out_dim], out[:n, half:half + out_dim]


def robust_gcn_conv(prep, out_dim, mean, var=None, adj0=None, adj1=None,
                    initial=False, *, block_rows=1024, block_k=1024):
    """prep/out_dim from prepare_robust_gcn_params. Returns (mean, var)."""
    return _forward(prep, mean, var, adj0, adj1, out_dim=out_dim,
                    initial=initial, block_rows=block_rows, block_k=block_k)


# ------------------------ reference (pure JAX, f32) ------------------------- #

def _reference(params, mean, var=None, adj0=None, adj1=None, initial=False):
    wm, bm, wv, bv = params["wm"], params["bm"], params["wv"], params["bv"]

    def elu(x):
        return jnp.where(x > 0, x, jnp.exp(jnp.minimum(x, 0.0)) - 1.0)

    if initial:
        m = elu(mean @ wm + bm)
        v = jnp.maximum(mean @ wv + bv, 0.0)
        return m, v
    m = elu(mean @ wm + bm)
    v = jnp.maximum(var @ wv + bv, 0.0) + 1e-6
    att = jnp.exp(-v)
    m = m * att
    v = v * att * att
    return adj0 @ m, adj1 @ v


# --------------------------------- main ------------------------------------- #

if __name__ == "__main__":
    N, IN_DIM, OUT_DIM = 512, 64, 32   # small synthetic shapes

    key = jax.random.PRNGKey(0)
    k_x, k_v, k_wm, k_bm, k_wv, k_bv, k_a0, k_a1 = jax.random.split(key, 8)

    bound = 1.0 / (IN_DIM ** 0.5)
    params = {
        "wm": jax.random.uniform(k_wm, (IN_DIM, OUT_DIM), jnp.float32, -bound, bound),
        "bm": jax.random.uniform(k_bm, (1, OUT_DIM), jnp.float32, -bound, bound),
        "wv": jax.random.uniform(k_wv, (IN_DIM, OUT_DIM), jnp.float32, -bound, bound),
        "bv": jax.random.uniform(k_bv, (1, OUT_DIM), jnp.float32, -bound, bound),
    }
    # One-time slab preparation (hoisted out of the per-call path).
    prep, out_dim = prepare_robust_gcn_params(params["wm"], params["bm"],
                                              params["wv"], params["bv"])

    # ---- initial=True path: input features [N, IN_DIM] ----
    x = jax.random.normal(k_x, (N, IN_DIM), jnp.float32)
    m0, v0 = robust_gcn_conv(prep, out_dim, x, initial=True)
    jax.block_until_ready((m0, v0))
    m0_ref, v0_ref = _reference(params, x, initial=True)
    assert m0.shape == m0_ref.shape and v0.shape == v0_ref.shape
    assert jnp.allclose(m0, m0_ref, atol=3e-2, rtol=3e-2), \
        float(jnp.max(jnp.abs(m0 - m0_ref)))
    assert jnp.allclose(v0, v0_ref, atol=3e-2, rtol=3e-2), \
        float(jnp.max(jnp.abs(v0 - v0_ref)))

    # ---- initial=False path: mean/var [N, IN_DIM], adj0/adj1 [N, N] ----
    mean_in = jax.random.normal(k_x, (N, IN_DIM), jnp.float32)
    var_in = jnp.abs(jax.random.normal(k_v, (N, IN_DIM), jnp.float32))
    adj0 = jax.random.uniform(k_a0, (N, N), jnp.float32)
    adj1 = jax.random.uniform(k_a1, (N, N), jnp.float32)
    adj0 = adj0 / jnp.sum(adj0, axis=1, keepdims=True)   # row-normalized
    adj1 = adj1 / jnp.sum(adj1, axis=1, keepdims=True)

    m1, v1 = robust_gcn_conv(prep, out_dim, mean_in, var_in, adj0, adj1,
                             initial=False)
    jax.block_until_ready((m1, v1))
    m1_ref, v1_ref = _reference(params, mean_in, var_in, adj0, adj1,
                                initial=False)
    assert jnp.allclose(m1, m1_ref, atol=3e-2, rtol=3e-2), \
        float(jnp.max(jnp.abs(m1 - m1_ref)))
    assert jnp.allclose(v1, v1_ref, atol=3e-2, rtol=3e-2), \
        float(jnp.max(jnp.abs(v1 - v1_ref)))

    print("KERNEL_OK")
</pallas_src>

<mosaic_0001>
module attributes {stable_mosaic.version = 11 : i64} {
  func.func @_proj_initial_kernel(%arg0: i32, %arg1: memref<256x64xf32, #tpu.memory_space<vmem>>, %arg2: memref<64x128xbf16, #tpu.memory_space<vmem>>, %arg3: memref<1x128xf32, #tpu.memory_space<vmem>>, %arg4: memref<256x128xf32, #tpu.memory_space<vmem>>) attributes {dimension_semantics = [#tpu.dimension_semantics<parallel>], iteration_bounds = array<i64: 2>, scalar_prefetch = 0 : i64, scratch_operands = 0 : i64, tpu.core_type = #tpu.core_type<tc>, window_params = [{transform_indices = @transform_0, window_bounds = array<i64: 256, 64>}, {pipeline_mode = #tpu.pipeline_mode<synchronous>, transform_indices = @transform_1, window_bounds = array<i64: 64, 128>}, {pipeline_mode = #tpu.pipeline_mode<synchronous>, transform_indices = @transform_2, window_bounds = array<i64: 1, 128>}, {transform_indices = @transform_3, window_bounds = array<i64: 256, 128>}]} {
    %c0 = arith.constant 0 : index
    %c0_0 = arith.constant 0 : index
    %0 = vector.load %arg1[%c0, %c0_0] : memref<256x64xf32, #tpu.memory_space<vmem>>, vector<256x64xf32>
    %1 = arith.truncf %0 : vector<256x64xf32> to vector<256x64xbf16>
    %c0_1 = arith.constant 0 : index
    %c0_2 = arith.constant 0 : index
    %2 = vector.load %arg2[%c0_1, %c0_2] : memref<64x128xbf16, #tpu.memory_space<vmem>>, vector<64x128xbf16>
    %cst = arith.constant dense<0.000000e+00> : vector<256x128xf32>
    %3 = tpu.matmul %1, %2, %cst {dimension_numbers = #tpu.dot_dimension_numbers<[1], [0], [0], [1], [0, 0, 1, 1], [], []>} : vector<256x64xbf16>, vector<64x128xbf16>, vector<256x128xf32> -> vector<256x128xf32>
    %c0_3 = arith.constant 0 : index
    %c0_4 = arith.constant 0 : index
    %4 = vector.load %arg3[%c0_3, %c0_4] : memref<1x128xf32, #tpu.memory_space<vmem>>, vector<1x128xf32>
    %5 = vector.broadcast %4 : vector<1x128xf32> to vector<256x128xf32>
    %6 = arith.addf %3, %5 : vector<256x128xf32>
    %7 = tpu.iota {dimensions = array<i32: 1>} : vector<256x128xi32>
    %c64_i32 = arith.constant 64 : i32
    %8 = vector.broadcast %c64_i32 : i32 to vector<256x128xi32>
    %9 = arith.cmpi slt, %7, %8 : vector<256x128xi32>
    %cst_5 = arith.constant 0.000000e+00 : f32
    %10 = vector.broadcast %cst_5 : f32 to vector<256x128xf32>
    %11 = arith.cmpf ogt, %6, %10 : vector<256x128xf32>
    %cst_6 = arith.constant 0.000000e+00 : f32
    %12 = vector.broadcast %cst_6 : f32 to vector<256x128xf32>
    %13 = arith.minimumf %6, %12 : vector<256x128xf32>
    %14 = math.exp %13 : vector<256x128xf32>
    %cst_7 = arith.constant 1.000000e+00 : f32
    %15 = vector.broadcast %cst_7 : f32 to vector<256x128xf32>
    %16 = arith.subf %14, %15 : vector<256x128xf32>
    %17 = arith.select %11, %6, %16 : vector<256x128xi1>, vector<256x128xf32>
    %cst_8 = arith.constant 0.000000e+00 : f32
    %18 = vector.broadcast %cst_8 : f32 to vector<256x128xf32>
    %19 = arith.maximumf %6, %18 : vector<256x128xf32>
    %20 = arith.select %9, %17, %19 : vector<256x128xi1>, vector<256x128xf32>
    %c0_9 = arith.constant 0 : index
    %c0_10 = arith.constant 0 : index
    %21 = vector.load %arg4[%c0_9, %c0_10] : memref<256x128xf32, #tpu.memory_space<vmem>>, vector<256x128xf32>
    tpu.vector_store %arg4[%c0_9, %c0_10], %20 {strides = array<i32>} : memref<256x128xf32, #tpu.memory_space<vmem>>, vector<256x128xf32>,
    return
  }
  func.func @transform_0(%arg0: i32) -> (i32, i32) {
    %c0_i32 = arith.constant 0 : i32
    %c0_i32_0 = arith.constant 0 : i32
    return %arg0, %c0_i32 : i32, i32
  }
  func.func @transform_1(%arg0: i32) -> (i32, i32) {
    %c0_i32 = arith.constant 0 : i32
    %c0_i32_0 = arith.constant 0 : i32
    %c0_i32_1 = arith.constant 0 : i32
    return %c0_i32, %c0_i32_0 : i32, i32
  }
  func.func @transform_2(%arg0: i32) -> (i32, i32) {
    %c0_i32 = arith.constant 0 : i32
    %c0_i32_0 = arith.constant 0 : i32
    %c0_i32_1 = arith.constant 0 : i32
    return %c0_i32, %c0_i32_0 : i32, i32
  }
  func.func @transform_3(%arg0: i32) -> (i32, i32) {
    %c0_i32 = arith.constant 0 : i32
    %c0_i32_0 = arith.constant 0 : i32
    return %arg0, %c0_i32 : i32, i32
  }
}

</mosaic_0001>

<llo_original>
// kernel: _forward.1
$region0: #{_forward.1}
  #allocation0 [shape = 'u32[]', space=smem, size = 0x4, offset = 0x4, fixed_abs, tag = 'smem constant byte address 0x4 - core index']
  #allocation1 [shape = 'u32[144,128]{1,0:T(1,128)}', space=vmem, size = 0x12000, scoped, tag = 'internal scratch']
  %s0 = inlined_call_operand.vmem [shape: f32[512,64], index: 0, kind: input, shape index: {}]
  %s1 = inlined_call_operand.vmem [shape: bf16[64,128], index: 1, kind: input, shape index: {}]
  %s2 = inlined_call_operand.vmem [shape: f32[1,128], index: 2, kind: input, shape index: {}]
  %s3 = inlined_call_operand.vmem [shape: f32[512,128], index: 3, kind: output, shape index: {}]
  %s4 = sld [smem:[#allocation0]]
  $region45: #{_forward.1} parent=0
    _
  %s6 = ssub.s32 1, %s4
  %s7 = scalar_select 0, %s6, %s4
  loop: start=0, step=1, limit=4
  $region2: #{_forward.1} parent=0 // loop_pre_header
    _
  $region3: #{_forward.1} parent=0 // loop_header
    %s9 = sphi 0, %s13
    %p10 = scmp.ge.s32.totalorder %s9, 4
    %s19 = sphi 0, %s21
    %s22 = sphi 0, %s19
    %s23 = sphi 0, %s22
    %s39 = sphi 0, %s23
    %s43 = sphi 0, %s43
    %s45 = sphi 0, %s43
    %s46 = sphi 0, %s45
    %s60 = sphi 0, %s46
    %s64 = sphi 0, %s64
    %s66 = sphi 0, %s64
    %s67 = sphi 0, %s66
    %s81 = sphi 0, %s67
    %s87 = sphi 0, %s89
    %s90 = sphi 0, %s87
    %s91 = sphi 0, %s90
    %s107 = sphi 0, %s91
  $region4: #{_forward.1} parent=0 // loop_header_branch
    %12 = sbr.rel (%p10) target = $region8
  $region5: #{_forward.1} parent=0 // loop_body
    %s14 = ssub.s32 %s9, 1
    %s15 = ssub.s32 %s9, 2
    %s16 = sadd.s32 %s9, 1
    %s17 = ssub.s32 %s9, %s16
    %p18 = scmp.eq.s32.totalorder %s17, 0
    %s20 = sadd.s32 %s19, 1
    %s21 = scalar_select %p18, %s19, %s20
    %p24 = pneg %p18
    %p25 = scmp.eq.s32.totalorder %s9, 1
    %p26 = por %p24, %p25
    %p27 = scmp.ne.s32.totalorder %s19, %s22
    %p28 = scmp.eq.s32.totalorder %s9, 0
    %p29 = por %p27, %p28
    %p30 = scmp.ne.s32.totalorder %s19, %s22
    %p31 = scmp.eq.s32.totalorder %s14, 1
    %p32 = por %p30, %p31
    %p33 = scmp.ne.s32.totalorder %s22, %s23
    %p34 = scmp.eq.s32.totalorder %s14, 0
    %p35 = por %p33, %p34
    %p36 = scmp.ne.s32.totalorder %s22, %s23
    %p37 = scmp.eq.s32.totalorder %s15, 1
    %p38 = por %p36, %p37
    %p40 = scmp.ne.s32.totalorder %s23, %s39
    %p41 = scmp.eq.s32.totalorder %s15, 0
    %p42 = por %p40, %p41
    %s44 = sadd.s32 %s43, 1
    %p47 = scmp.eq.s32.totalorder %s9, 1
    %p48 = scmp.ne.s32.totalorder %s43, %s45
    %p49 = scmp.eq.s32.totalorder %s9, 0
    %p50 = por %p48, %p49
    %p51 = scmp.ne.s32.totalorder %s43, %s45
    %p52 = scmp.eq.s32.totalorder %s14, 1
    %p53 = por %p51, %p52
    %p54 = scmp.ne.s32.totalorder %s45, %s46
    %p55 = scmp.eq.s32.totalorder %s14, 0
    %p56 = por %p54, %p55
    %p57 = scmp.ne.s32.totalorder %s45, %s46
    %p58 = scmp.eq.s32.totalorder %s15, 1
    %p59 = por %p57, %p58
    %p61 = scmp.ne.s32.totalorder %s46, %s60
    %p62 = scmp.eq.s32.totalorder %s15, 0
    %p63 = por %p61, %p62
    %s65 = sadd.s32 %s64, 1
    %p68 = scmp.eq.s32.totalorder %s9, 1
    %p69 = scmp.ne.s32.totalorder %s64, %s66
    %p70 = scmp.eq.s32.totalorder %s9, 0
    %p71 = por %p69, %p70
    %p72 = scmp.ne.s32.totalorder %s64, %s66
    %p73 = scmp.eq.s32.totalorder %s14, 1
    %p74 = por %p72, %p73
    %p75 = scmp.ne.s32.totalorder %s66, %s67
    %p76 = scmp.eq.s32.totalorder %s14, 0
    %p77 = por %p75, %p76
    %p78 = scmp.ne.s32.totalorder %s66, %s67
    %p79 = scmp.eq.s32.totalorder %s15, 1
    %p80 = por %p78, %p79
    %p82 = scmp.ne.s32.totalorder %s67, %s81
    %p83 = scmp.eq.s32.totalorder %s15, 0
    %p84 = por %p82, %p83
    %s85 = ssub.s32 %s9, %s16
    %p86 = scmp.eq.s32.totalorder %s85, 0
    %s88 = sadd.s32 %s87, 1
    %s89 = scalar_select %p86, %s87, %s88
    %p92 = pneg %p86
    %p93 = scmp.eq.s32.totalorder %s9, 1
    %p94 = por %p92, %p93
    %p95 = scmp.ne.s32.totalorder %s87, %s90
    %p96 = scmp.eq.s32.totalorder %s9, 0
    %p97 = por %p95, %p96
    %p98 = scmp.ne.s32.totalorder %s87, %s90
    %p99 = scmp.eq.s32.totalorder %s14, 1
    %p100 = por %p98, %p99
    %p101 = scmp.ne.s32.totalorder %s90, %s91
    %p102 = scmp.eq.s32.totalorder %s14, 0
    %p103 = por %p101, %p102
    %p104 = scmp.ne.s32.totalorder %s90, %s91
    %p105 = scmp.eq.s32.totalorder %s15, 1
    %p106 = por %p104, %p105
    %p108 = scmp.ne.s32.totalorder %s91, %s107
    %p109 = scmp.eq.s32.totalorder %s15, 0
    %p110 = por %p108, %p109
    %p111 = scmp.le.s32.totalorder 1, %s9
    %p112 = scmp.lt.s32.totalorder %s9, 3
    %p113 = pnand %p111, %p112
    %p114 = pneg %p113
    // Predicated region
    $region9: #{_forward.1} parent=5 // pred_check
      _
    $region10: #{_forward.1} parent=5 // pred_check_branch
      %116 = sbr.rel (%p113) target = $region12
    $region11: #{_forward.1} parent=5 // pred_region
      %s117 = ssub.s32 %s9, 1
      // Predicated region
      $region13: #{_forward.1} parent=11 // pred_check
        %p118 = pneg %p56
      $region14: #{_forward.1} parent=11 // pred_check_branch
        %120 = sbr.rel (%p118) target = $region16
      $region15: #{_forward.1} parent=11 // pred_region
        _
      $region16: #{_forward.1} parent=11 // pred_fallthru
        _
      // Predicated region
      $region17: #{_forward.1} parent=11 // pred_check
        %p121 = pneg %p77
      $region18: #{_forward.1} parent=11 // pred_check_branch
        %123 = sbr.rel (%p121) target = $region20
      $region19: #{_forward.1} parent=11 // pred_region
        _
      $region20: #{_forward.1} parent=11 // pred_fallthru
        _
    $region12: #{_forward.1} parent=5 // pred_fallthru
      _
    %p124 = scmp.lt.s32.totalorder %s9, 2
    // Predicated region
    $region21: #{_forward.1} parent=5 // pred_check
      %p125 = pneg %p124
    $region22: #{_forward.1} parent=5 // pred_check_branch
      %127 = sbr.rel (%p125) target = $region24
    $region23: #{_forward.1} parent=5 // pred_region
      // Predicated region
      $region25: #{_forward.1} parent=23 // pred_check
        %p128 = pneg %p29
      $region26: #{_forward.1} parent=23 // pred_check_branch
        %130 = sbr.rel (%p128) target = $region28
      $region27: #{_forward.1} parent=23 // pred_region
        %s131 = smul.u32 32, %s9
        %p132 = scmp.lt.s32.totalorder %s131, 63
        %s133 = scalar_select %p132, %s131, 63
        %s134 = smul.addr %s133, 8
        %s135 = scalar_lea.vmem %s0, %s134
        %s136 = smul.u32 32, %s9
      $region28: #{_forward.1} parent=23 // pred_fallthru
        _
    $region24: #{_forward.1} parent=5 // pred_fallthru
      _
    %p137 = scmp.le.s32.totalorder 1, %s9
    %p138 = scmp.lt.s32.totalorder %s9, 3
    %p139 = pnand %p137, %p138
    %p140 = pneg %p139
    // Predicated region
    $region29: #{_forward.1} parent=5 // pred_check
      _
    $region30: #{_forward.1} parent=5 // pred_check_branch
      %142 = sbr.rel (%p139) target = $region32
    $region31: #{_forward.1} parent=5 // pred_region
      %s143 = ssub.s32 %s9, 1
      %s144 = smul.u32 32, %s14
      %p145 = scmp.lt.s32.totalorder %s144, 63
      %s146 = scalar_select %p145, %s144, 63
      %s147 = smul.addr %s146, 8
      %s148 = scalar_lea.vmem %s0, %s147
      %p149 = pneg %p35
      %p150 = pneg %p32
      %p151 = pneg %p56
      %p152 = pneg %p53
      %p153 = pneg %p77
      %p154 = pneg %p74
      %p155 = pneg %p103
      %p156 = pneg %p100
      %s157 = smul.u32 32, %s14
      %p158 = scmp.lt.s32.totalorder %s157, 63
      %s159 = scalar_select %p158, %s157, 63
      %s160 = smul.addr %s159, 8
      %s161 = scalar_lea.vmem %s3, %s160
      %s162 = smul.u32 32, %s14
      %p163 = scmp.lt.s32.totalorder %s162, 63
      %s164 = scalar_select %p163, %s162, 63
      %s165 = smul.addr %s164, 8
      %s166 = scalar_lea.vmem %s0, %s165
      %s167 = smul.u32 32, %s14
      %s168 = smul.u32 32, %s14
      %p169 = scmp.lt.s32.totalorder %s168, 63
      %s170 = scalar_select %p169, %s168, 63
      %s171 = smul.addr %s170, 8
      %s172 = scalar_lea.vmem %s3, %s171
      %s173 = smul.u32 32, %s14
      %v175 = vld [vmem:[%s166] sm:$0xff]
      %v176 = vld [vmem:[%s166 + $0x8] sm:$0xff]
      %v177 = vld [vmem:[%s166 + $0x10] sm:$0xff]
      %v178 = vld [vmem:[%s166 + $0x18] sm:$0xff]
      %v179 = vld [vmem:[%s166 + $0x20] sm:$0xff]
      %v180 = vld [vmem:[%s166 + $0x28] sm:$0xff]
      %v181 = vld [vmem:[%s166 + $0x30] sm:$0xff]
      %v182 = vld [vmem:[%s166 + $0x38] sm:$0xff]
      %v183 = vld [vmem:[%s166 + $0x40] sm:$0xff]
      %v184 = vld [vmem:[%s166 + $0x48] sm:$0xff]
      %v185 = vld [vmem:[%s166 + $0x50] sm:$0xff]
      %v186 = vld [vmem:[%s166 + $0x58] sm:$0xff]
      %v187 = vld [vmem:[%s166 + $0x60] sm:$0xff]
      %v188 = vld [vmem:[%s166 + $0x68] sm:$0xff]
      %v189 = vld [vmem:[%s166 + $0x70] sm:$0xff]
      %v190 = vld [vmem:[%s166 + $0x78] sm:$0xff]
      %v191 = vld [vmem:[%s166 + $0x80] sm:$0xff]
      %v192 = vld [vmem:[%s166 + $0x88] sm:$0xff]
      %v193 = vld [vmem:[%s166 + $0x90] sm:$0xff]
      %v194 = vld [vmem:[%s166 + $0x98] sm:$0xff]
      %v195 = vld [vmem:[%s166 + $0xa0] sm:$0xff]
      %v196 = vld [vmem:[%s166 + $0xa8] sm:$0xff]
      %v197 = vld [vmem:[%s166 + $0xb0] sm:$0xff]
      %v198 = vld [vmem:[%s166 + $0xb8] sm:$0xff]
      %v199 = vld [vmem:[%s166 + $0xc0] sm:$0xff]
      %v200 = vld [vmem:[%s166 + $0xc8] sm:$0xff]
      %v201 = vld [vmem:[%s166 + $0xd0] sm:$0xff]
      %v202 = vld [vmem:[%s166 + $0xd8] sm:$0xff]
      %v203 = vld [vmem:[%s166 + $0xe0] sm:$0xff]
      %v204 = vld [vmem:[%s166 + $0xe8] sm:$0xff]
      %v205 = vld [vmem:[%s166 + $0xf0] sm:$0xff]
      %v206 = vld [vmem:[%s166 + $0xf8] sm:$0xff]
      %v207 = vpack.c.bf16 %v176, %v175
      %v208 = vpack.c.bf16 %v178, %v177
      %v209 = vpack.c.bf16 %v180, %v179
      %v210 = vpack.c.bf16 %v182, %v181
      %v211 = vpack.c.bf16 %v184, %v183
      %v212 = vpack.c.bf16 %v186, %v185
      %v213 = vpack.c.bf16 %v188, %v187
      %v214 = vpack.c.bf16 %v190, %v189
      %v215 = vpack.c.bf16 %v192, %v191
      %v216 = vpack.c.bf16 %v194, %v193
      %v217 = vpack.c.bf16 %v196, %v195
      %v218 = vpack.c.bf16 %v198, %v197
      %v219 = vpack.c.bf16 %v200, %v199
      %v220 = vpack.c.bf16 %v202, %v201
      %v221 = vpack.c.bf16 %v204, %v203
      %v222 = vpack.c.bf16 %v206, %v205
      %v223 = vld [vmem:[%s1] sm:$0xf]
      %v224 = vld [vmem:[%s1 + $0x4] sm:$0xf]
      %v225 = vld [vmem:[%s1 + $0x8] sm:$0xf]
      %v226 = vld [vmem:[%s1 + $0xc] sm:$0xf]
      %v227 = vld [vmem:[%s1 + $0x10] sm:$0xf]
      %v228 = vld [vmem:[%s1 + $0x14] sm:$0xf]
      %v229 = vld [vmem:[%s1 + $0x18] sm:$0xf]
      %v230 = vld [vmem:[%s1 + $0x1c] sm:$0xf]
      %v231 = vld [vmem:[%s2] sm:$0x1]
      %v233 = vlaneseq
      %v234 = vshrl.u32 %v233, 7
      %v235 = vsub.s32 0, %v234
      %v236 = vrot.slane %v231, %v235
      %v246 = vunpack.c.l.b16 %v223
      %v247 = vunpack.c.l.b16 %v224
      %v248 = vunpack.c.l.b16 %v225
      %v249 = vunpack.c.l.b16 %v226
      %v250 = vunpack.c.l.b16 %v227
      %v251 = vunpack.c.l.b16 %v228
      %v252 = vunpack.c.l.b16 %v229
      %v253 = vunpack.c.l.b16 %v230
      %v254 = vpack.c.b16 %v247, %v246
      %v255 = vpack.c.b16 %v249, %v248
      %v256 = vpack.c.b16 %v251, %v250
      %v257 = vpack.c.b16 %v253, %v252
      %vm262 = vcmask 523264
      %v264 = vsel %vm262, %v207, 0
      %v267 = vsel %vm262, %v208, 0
      %v270 = vsel %vm262, %v209, 0
      %v273 = vsel %vm262, %v210, 0
      %v276 = vsel %vm262, %v211, 0
      %v279 = vsel %vm262, %v212, 0
      %v282 = vsel %vm262, %v213, 0
      %v285 = vsel %vm262, %v214, 0
      %v288 = vsel %vm262, %v215, 0
      %v291 = vsel %vm262, %v216, 0
      %v294 = vsel %vm262, %v217, 0
      %v297 = vsel %vm262, %v218, 0
      %v300 = vsel %vm262, %v219, 0
      %v303 = vsel %vm262, %v220, 0
      %v306 = vsel %vm262, %v221, 0
      %v309 = vsel %vm262, %v222, 0
      %311 = vmatprep.subr.bf16.mxu0 0
      %312 = vmatpush1.bf16.msra.mxu0 0
      %313 = vmatprep.subr.bf16.mxu0 0
      %314 = vmatpush1.bf16.msra.mxu0 0
      %315 = vmatprep.subr.bf16.mxu0 0
      %316 = vmatpush1.bf16.msra.mxu0 0
      %317 = vmatprep.subr.bf16.mxu0 0
      %318 = vmatpush1.bf16.msra.mxu0 0
      %319 = vmatprep.subr.bf16.mxu0 0
      %320 = vmatpush1.bf16.msra.mxu0 %v257
      %321 = vmatprep.subr.bf16.mxu0 0
      %322 = vmatpush1.bf16.msra.mxu0 %v256
      %323 = vmatprep.subr.bf16.mxu0 0
      %324 = vmatpush1.bf16.msra.mxu0 %v255
      %325 = vmatprep.subr.bf16.mxu0 0
      %326 = vmatpush1.bf16.msra.mxu0 %v254
      %327 = vmatprep.subr.bf16.mxu0 0
      %328 = vmatpush2.bf16.msra.mxu0 0
      %329 = vmatprep.subr.bf16.mxu0 0
      %330 = vmatpush2.bf16.msra.mxu0 0
      %331 = vmatprep.subr.bf16.mxu0 0
      %332 = vmatpush2.bf16.msra.mxu0 0
      %333 = vmatprep.subr.bf16.mxu0 0
      %334 = vmatpush2.bf16.msra.mxu0 0
      %335 = vmatprep.subr.bf16.mxu0 0
      %336 = vmatpush2.bf16.msra.mxu0 0
      %337 = vmatprep.subr.bf16.mxu0 0
      %338 = vmatpush2.bf16.msra.mxu0 0
      %339 = vmatprep.subr.bf16.mxu0 0
      %340 = vmatpush2.bf16.msra.mxu0 0
      %341 = vmatprep.subr.bf16.mxu0 0
      %342 = vmatpush2.bf16.msra.mxu0 0
      %343 = vmatprep.mubr.bf16.mxu0 0
      %344 = vmatmul.mubr.bf16.gmra.mxu0 %v264
      %v345 = vpop.f32.mrf.mxu0
      %v346 = vadd.f32 %v236, %v345
      %v347 = vpop.f32.mrf.mxu0
      %v348 = vpop.f32.mrf.mxu0
      %v349 = vadd.f32 %v236, %v348
      %v350 = vpop.f32.mrf.mxu0
      %351 = vmatprep.mubr.bf16.mxu0 0
      %352 = vmatmul.mubr.bf16.gmra.mxu0 %v267
      %v353 = vpop.f32.mrf.mxu0
      %v354 = vadd.f32 %v236, %v353
      %v355 = vpop.f32.mrf.mxu0
      %v356 = vpop.f32.mrf.mxu0
      %v357 = vadd.f32 %v236, %v356
      %v358 = vpop.f32.mrf.mxu0
      %359 = vmatprep.mubr.bf16.mxu0 0
      %360 = vmatmul.mubr.bf16.gmra.mxu0 %v270
      %v361 = vpop.f32.mrf.mxu0
      %v362 = vadd.f32 %v236, %v361
      %v363 = vpop.f32.mrf.mxu0
      %v364 = vpop.f32.mrf.mxu0
      %v365 = vadd.f32 %v236, %v364
      %v366 = vpop.f32.mrf.mxu0
      %367 = vmatprep.mubr.bf16.mxu0 0
      %368 = vmatmul.mubr.bf16.gmra.mxu0 %v273
      %v369 = vpop.f32.mrf.mxu0
      %v370 = vadd.f32 %v236, %v369
      %v371 = vpop.f32.mrf.mxu0
      %v372 = vpop.f32.mrf.mxu0
      %v373 = vadd.f32 %v236, %v372
      %v374 = vpop.f32.mrf.mxu0
      %375 = vmatprep.mubr.bf16.mxu0 0
      %376 = vmatmul.mubr.bf16.gmra.mxu0 %v276
      %v377 = vpop.f32.mrf.mxu0
      %v378 = vadd.f32 %v236, %v377
      %v379 = vpop.f32.mrf.mxu0
      %v380 = vpop.f32.mrf.mxu0
      %v381 = vadd.f32 %v236, %v380
      %v382 = vpop.f32.mrf.mxu0
      %383 = vmatprep.mubr.bf16.mxu0 0
      %384 = vmatmul.mubr.bf16.gmra.mxu0 %v279
      %v385 = vpop.f32.mrf.mxu0
      %v386 = vadd.f32 %v236, %v385
      %v387 = vpop.f32.mrf.mxu0
      %v388 = vpop.f32.mrf.mxu0
      %v389 = vadd.f32 %v236, %v388
      %v390 = vpop.f32.mrf.mxu0
      %391 = vmatprep.mubr.bf16.mxu0 0
      %392 = vmatmul.mubr.bf16.gmra.mxu0 %v282
      %v393 = vpop.f32.mrf.mxu0
      %v394 = vadd.f32 %v236, %v393
      %v395 = vpop.f32.mrf.mxu0
      %v396 = vpop.f32.mrf.mxu0
      %v397 = vadd.f32 %v236, %v396
      %v398 = vpop.f32.mrf.mxu0
      %399 = vmatprep.mubr.bf16.mxu0 0
      %400 = vmatmul.mubr.bf16.gmra.mxu0 %v285
      %v401 = vpop.f32.mrf.mxu0
      %v402 = vadd.f32 %v236, %v401
      %v403 = vpop.f32.mrf.mxu0
      %v404 = vpop.f32.mrf.mxu0
      %v405 = vadd.f32 %v236, %v404
      %v406 = vpop.f32.mrf.mxu0
      %407 = vmatprep.mubr.bf16.mxu0 0
      %408 = vmatmul.mubr.bf16.gmra.mxu0 %v288
      %v409 = vpop.f32.mrf.mxu0
      %v410 = vadd.f32 %v236, %v409
      %v411 = vpop.f32.mrf.mxu0
      %v412 = vpop.f32.mrf.mxu0
      %v413 = vadd.f32 %v236, %v412
      %v414 = vpop.f32.mrf.mxu0
      %415 = vmatprep.mubr.bf16.mxu0 0
      %416 = vmatmul.mubr.bf16.gmra.mxu0 %v291
      %v417 = vpop.f32.mrf.mxu0
      %v418 = vadd.f32 %v236, %v417
      %v419 = vpop.f32.mrf.mxu0
      %v420 = vpop.f32.mrf.mxu0
      %v421 = vadd.f32 %v236, %v420
      %v422 = vpop.f32.mrf.mxu0
      %423 = vmatprep.mubr.bf16.mxu0 0
      %424 = vmatmul.mubr.bf16.gmra.mxu0 %v294
      %v425 = vpop.f32.mrf.mxu0
      %v426 = vadd.f32 %v236, %v425
      %v427 = vpop.f32.mrf.mxu0
      %v428 = vpop.f32.mrf.mxu0
      %v429 = vadd.f32 %v236, %v428
      %v430 = vpop.f32.mrf.mxu0
      %431 = vmatprep.mubr.bf16.mxu0 0
      %432 = vmatmul.mubr.bf16.gmra.mxu0 %v297
      %v433 = vpop.f32.mrf.mxu0
      %v434 = vadd.f32 %v236, %v433
      %v435 = vpop.f32.mrf.mxu0
      %v436 = vpop.f32.mrf.mxu0
      %v437 = vadd.f32 %v236, %v436
      %v438 = vpop.f32.mrf.mxu0
      %439 = vmatprep.mubr.bf16.mxu0 0
      %440 = vmatmul.mubr.bf16.gmra.mxu0 %v300
      %v441 = vpop.f32.mrf.mxu0
      %v442 = vadd.f32 %v236, %v441
      %v443 = vpop.f32.mrf.mxu0
      %v444 = vpop.f32.mrf.mxu0
      %v445 = vadd.f32 %v236, %v444
      %v446 = vpop.f32.mrf.mxu0
      %447 = vmatprep.mubr.bf16.mxu0 0
      %448 = vmatmul.mubr.bf16.gmra.mxu0 %v303
      %v449 = vpop.f32.mrf.mxu0
      %v450 = vadd.f32 %v236, %v449
      %v451 = vpop.f32.mrf.mxu0
      %v452 = vpop.f32.mrf.mxu0
      %v453 = vadd.f32 %v236, %v452
      %v454 = vpop.f32.mrf.mxu0
      %455 = vmatprep.mubr.bf16.mxu0 0
      %456 = vmatmul.mubr.bf16.gmra.mxu0 %v306
      %v457 = vpop.f32.mrf.mxu0
      %v458 = vadd.f32 %v236, %v457
      %v459 = vpop.f32.mrf.mxu0
      %v460 = vpop.f32.mrf.mxu0
      %v461 = vadd.f32 %v236, %v460
      %v462 = vpop.f32.mrf.mxu0
      %463 = vmatprep.mubr.bf16.mxu0 0
      %464 = vmatmul.mubr.bf16.gmra.mxu0 %v309
      %v465 = vpop.f32.mrf.mxu0
      %v466 = vadd.f32 %v236, %v465
      %v467 = vpop.f32.mrf.mxu0
      %v468 = vpop.f32.mrf.mxu0
      %v469 = vadd.f32 %v236, %v468
      %v470 = vpop.f32.mrf.mxu0
      %471 = vdwg.mxu0
      %v472 = vlaneseq
      %v473 = vand.u32 %v472, 127
      %vm474 = vcmp.lt.s32.totalorder %v473, 64
      %vm475 = vcmp.gt.f32.partialorder %v346, 0.0
      %vm476 = vcmp.gt.f32.partialorder %v349, 0.0
      %vm477 = vcmp.gt.f32.partialorder %v354, 0.0
      %vm478 = vcmp.gt.f32.partialorder %v357, 0.0
      %vm479 = vcmp.gt.f32.partialorder %v362, 0.0
      %vm480 = vcmp.gt.f32.partialorder %v365, 0.0
      %vm481 = vcmp.gt.f32.partialorder %v370, 0.0
      %vm482 = vcmp.gt.f32.partialorder %v373, 0.0
      %vm483 = vcmp.gt.f32.partialorder %v378, 0.0
      %vm484 = vcmp.gt.f32.partialorder %v381, 0.0
      %vm485 = vcmp.gt.f32.partialorder %v386, 0.0
      %vm486 = vcmp.gt.f32.partialorder %v389, 0.0
      %vm487 = vcmp.gt.f32.partialorder %v394, 0.0
      %vm488 = vcmp.gt.f32.partialorder %v397, 0.0
      %vm489 = vcmp.gt.f32.partialorder %v402, 0.0
      %vm490 = vcmp.gt.f32.partialorder %v405, 0.0
      %vm491 = vcmp.gt.f32.partialorder %v410, 0.0
      %vm492 = vcmp.gt.f32.partialorder %v413, 0.0
      %vm493 = vcmp.gt.f32.partialorder %v418, 0.0
      %vm494 = vcmp.gt.f32.partialorder %v421, 0.0
      %vm495 = vcmp.gt.f32.partialorder %v426, 0.0
      %vm496 = vcmp.gt.f32.partialorder %v429, 0.0
      %vm497 = vcmp.gt.f32.partialorder %v434, 0.0
      %vm498 = vcmp.gt.f32.partialorder %v437, 0.0
      %vm499 = vcmp.gt.f32.partialorder %v442, 0.0
      %vm500 = vcmp.gt.f32.partialorder %v445, 0.0
      %vm501 = vcmp.gt.f32.partialorder %v450, 0.0
      %vm502 = vcmp.gt.f32.partialorder %v453, 0.0
      %vm503 = vcmp.gt.f32.partialorder %v458, 0.0
      %vm504 = vcmp.gt.f32.partialorder %v461, 0.0
      %vm505 = vcmp.gt.f32.partialorder %v466, 0.0
      %vm506 = vcmp.gt.f32.partialorder %v469, 0.0
      %v507 = vmin.f32 %v346, 0.0
      %v508 = vmin.f32 %v349, 0.0
      %v509 = vmin.f32 %v354, 0.0
      %v510 = vmin.f32 %v357, 0.0
      %v511 = vmin.f32 %v362, 0.0
      %v512 = vmin.f32 %v365, 0.0
      %v513 = vmin.f32 %v370, 0.0
      %v514 = vmin.f32 %v373, 0.0
      %v515 = vmin.f32 %v378, 0.0
      %v516 = vmin.f32 %v381, 0.0
      %v517 = vmin.f32 %v386, 0.0
      %v518 = vmin.f32 %v389, 0.0
      %v519 = vmin.f32 %v394, 0.0
      %v520 = vmin.f32 %v397, 0.0
      %v521 = vmin.f32 %v402, 0.0
      %v522 = vmin.f32 %v405, 0.0
      %v523 = vmin.f32 %v410, 0.0
      %v524 = vmin.f32 %v413, 0.0
      %v525 = vmin.f32 %v418, 0.0
      %v526 = vmin.f32 %v421, 0.0
      %v527 = vmin.f32 %v426, 0.0
      %v528 = vmin.f32 %v429, 0.0
      %v529 = vmin.f32 %v434, 0.0
      %v530 = vmin.f32 %v437, 0.0
      %v531 = vmin.f32 %v442, 0.0
      %v532 = vmin.f32 %v445, 0.0
      %v533 = vmin.f32 %v450, 0.0
      %v534 = vmin.f32 %v453, 0.0
      %v535 = vmin.f32 %v458, 0.0
      %v536 = vmin.f32 %v461, 0.0
      %v537 = vmin.f32 %v466, 0.0
      %v538 = vmin.f32 %v469, 0.0
      %v539 = vmul.f32 %v507, 1.442695
      %v540 = vpow.pop %v539
      %v541 = vmul.f32 %v508, 1.442695
      %v542 = vpow.pop %v541
      %v543 = vmul.f32 %v509, 1.442695
      %v544 = vpow.pop %v543
      %v545 = vmul.f32 %v510, 1.442695
      %v546 = vpow.pop %v545
      %v547 = vmul.f32 %v511, 1.442695
      %v548 = vpow.pop %v547
      %v549 = vmul.f32 %v512, 1.442695
      %v550 = vpow.pop %v549
      %v551 = vmul.f32 %v513, 1.442695
      %v552 = vpow.pop %v551
      %v553 = vmul.f32 %v514, 1.442695
      %v554 = vpow.pop %v553
      %v555 = vmul.f32 %v515, 1.442695
      %v556 = vpow.pop %v555
      %v557 = vmul.f32 %v516, 1.442695
      %v558 = vpow.pop %v557
      %v559 = vmul.f32 %v517, 1.442695
      %v560 = vpow.pop %v559
      %v561 = vmul.f32 %v518, 1.442695
      %v562 = vpow.pop %v561
      %v563 = vmul.f32 %v519, 1.442695
      %v564 = vpow.pop %v563
      %v565 = vmul.f32 %v520, 1.442695
      %v566 = vpow.pop %v565
      %v567 = vmul.f32 %v521, 1.442695
      %v568 = vpow.pop %v567
      %v569 = vmul.f32 %v522, 1.442695
      %v570 = vpow.pop %v569
      %v571 = vmul.f32 %v523, 1.442695
      %v572 = vpow.pop %v571
      %v573 = vmul.f32 %v524, 1.442695
      %v574 = vpow.pop %v573
      %v575 = vmul.f32 %v525, 1.442695
      %v576 = vpow.pop %v575
      %v577 = vmul.f32 %v526, 1.442695
      %v578 = vpow.pop %v577
      %v579 = vmul.f32 %v527, 1.442695
      %v580 = vpow.pop %v579
      %v581 = vmul.f32 %v528, 1.442695
      %v582 = vpow.pop %v581
      %v583 = vmul.f32 %v529, 1.442695
      %v584 = vpow.pop %v583
      %v585 = vmul.f32 %v530, 1.442695
      %v586 = vpow.pop %v585
      %v587 = vmul.f32 %v531, 1.442695
      %v588 = vpow.pop %v587
      %v589 = vmul.f32 %v532, 1.442695
      %v590 = vpow.pop %v589
      %v591 = vmul.f32 %v533, 1.442695
      %v592 = vpow.pop %v591
      %v593 = vmul.f32 %v534, 1.442695
      %v594 = vpow.pop %v593
      %v595 = vmul.f32 %v535, 1.442695
      %v596 = vpow.pop %v595
      %v597 = vmul.f32 %v536, 1.442695
      %v598 = vpow.pop %v597
      %v599 = vmul.f32 %v537, 1.442695
      %v600 = vpow.pop %v599
      %v601 = vmul.f32 %v538, 1.442695
      %v602 = vpow.pop %v601
      %v603 = vsub.f32 %v540, 1.0
      %v604 = vsub.f32 %v542, 1.0
      %v605 = vsub.f32 %v544, 1.0
      %v606 = vsub.f32 %v546, 1.0
      %v607 = vsub.f32 %v548, 1.0
      %v608 = vsub.f32 %v550, 1.0
      %v609 = vsub.f32 %v552, 1.0
      %v610 = vsub.f32 %v554, 1.0
      %v611 = vsub.f32 %v556, 1.0
      %v612 = vsub.f32 %v558, 1.0
      %v613 = vsub.f32 %v560, 1.0
      %v614 = vsub.f32 %v562, 1.0
      %v615 = vsub.f32 %v564, 1.0
      %v616 = vsub.f32 %v566, 1.0
      %v617 = vsub.f32 %v568, 1.0
      %v618 = vsub.f32 %v570, 1.0
      %v619 = vsub.f32 %v572, 1.0
      %v620 = vsub.f32 %v574, 1.0
      %v621 = vsub.f32 %v576, 1.0
      %v622 = vsub.f32 %v578, 1.0
      %v623 = vsub.f32 %v580, 1.0
      %v624 = vsub.f32 %v582, 1.0
      %v625 = vsub.f32 %v584, 1.0
      %v626 = vsub.f32 %v586, 1.0
      %v627 = vsub.f32 %v588, 1.0
      %v628 = vsub.f32 %v590, 1.0
      %v629 = vsub.f32 %v592, 1.0
      %v630 = vsub.f32 %v594, 1.0
      %v631 = vsub.f32 %v596, 1.0
      %v632 = vsub.f32 %v598, 1.0
      %v633 = vsub.f32 %v600, 1.0
      %v634 = vsub.f32 %v602, 1.0
      %v635 = vsel %vm475, %v346, %v603
      %v636 = vsel %vm476, %v349, %v604
      %v637 = vsel %vm477, %v354, %v605
      %v638 = vsel %vm478, %v357, %v606
      %v639 = vsel %vm479, %v362, %v607
      %v640 = vsel %vm480, %v365, %v608
      %v641 = vsel %vm481, %v370, %v609
      %v642 = vsel %vm482, %v373, %v610
      %v643 = vsel %vm483, %v378, %v611
      %v644 = vsel %vm484, %v381, %v612
      %v645 = vsel %vm485, %v386, %v613
      %v646 = vsel %vm486, %v389, %v614
      %v647 = vsel %vm487, %v394, %v615
      %v648 = vsel %vm488, %v397, %v616
      %v649 = vsel %vm489, %v402, %v617
      %v650 = vsel %vm490, %v405, %v618
      %v651 = vsel %vm491, %v410, %v619
      %v652 = vsel %vm492, %v413, %v620
      %v653 = vsel %vm493, %v418, %v621
      %v654 = vsel %vm494, %v421, %v622
      %v655 = vsel %vm495, %v426, %v623
      %v656 = vsel %vm496, %v429, %v624
      %v657 = vsel %vm497, %v434, %v625
      %v658 = vsel %vm498, %v437, %v626
      %v659 = vsel %vm499, %v442, %v627
      %v660 = vsel %vm500, %v445, %v628
      %v661 = vsel %vm501, %v450, %v629
      %v662 = vsel %vm502, %v453, %v630
      %v663 = vsel %vm503, %v458, %v631
      %v664 = vsel %vm504, %v461, %v632
      %v665 = vsel %vm505, %v466, %v633
      %v666 = vsel %vm506, %v469, %v634
      %v667 = vmax.f32 %v346, 0.0
      %v668 = vmax.f32 %v349, 0.0
      %v669 = vmax.f32 %v354, 0.0
      %v670 = vmax.f32 %v357, 0.0
      %v671 = vmax.f32 %v362, 0.0
      %v672 = vmax.f32 %v365, 0.0
      %v673 = vmax.f32 %v370, 0.0
      %v674 = vmax.f32 %v373, 0.0
      %v675 = vmax.f32 %v378, 0.0
      %v676 = vmax.f32 %v381, 0.0
      %v677 = vmax.f32 %v386, 0.0
      %v678 = vmax.f32 %v389, 0.0
      %v679 = vmax.f32 %v394, 0.0
      %v680 = vmax.f32 %v397, 0.0
      %v681 = vmax.f32 %v402, 0.0
      %v682 = vmax.f32 %v405, 0.0
      %v683 = vmax.f32 %v410, 0.0
      %v684 = vmax.f32 %v413, 0.0
      %v685 = vmax.f32 %v418, 0.0
      %v686 = vmax.f32 %v421, 0.0
      %v687 = vmax.f32 %v426, 0.0
      %v688 = vmax.f32 %v429, 0.0
      %v689 = vmax.f32 %v434, 0.0
      %v690 = vmax.f32 %v437, 0.0
      %v691 = vmax.f32 %v442, 0.0
      %v692 = vmax.f32 %v445, 0.0
      %v693 = vmax.f32 %v450, 0.0
      %v694 = vmax.f32 %v453, 0.0
      %v695 = vmax.f32 %v458, 0.0
      %v696 = vmax.f32 %v461, 0.0
      %v697 = vmax.f32 %v466, 0.0
      %v698 = vmax.f32 %v469, 0.0
      %v699 = vsel %vm474, %v635, %v667
      %v700 = vsel %vm474, %v636, %v668
      %v701 = vsel %vm474, %v637, %v669
      %v702 = vsel %vm474, %v638, %v670
      %v703 = vsel %vm474, %v639, %v671
      %v704 = vsel %vm474, %v640, %v672
      %v705 = vsel %vm474, %v641, %v673
      %v706 = vsel %vm474, %v642, %v674
      %v707 = vsel %vm474, %v643, %v675
      %v708 = vsel %vm474, %v644, %v676
      %v709 = vsel %vm474, %v645, %v677
      %v710 = vsel %vm474, %v646, %v678
      %v711 = vsel %vm474, %v647, %v679
      %v712 = vsel %vm474, %v648, %v680
      %v713 = vsel %vm474, %v649, %v681
      %v714 = vsel %vm474, %v650, %v682
      %v715 = vsel %vm474, %v651, %v683
      %v716 = vsel %vm474, %v652, %v684
      %v717 = vsel %vm474, %v653, %v685
      %v718 = vsel %vm474, %v654, %v686
      %v719 = vsel %vm474, %v655, %v687
      %v720 = vsel %vm474, %v656, %v688
      %v721 = vsel %vm474, %v657, %v689
      %v722 = vsel %vm474, %v658, %v690
      %v723 = vsel %vm474, %v659, %v691
      %v724 = vsel %vm474, %v660, %v692
      %v725 = vsel %vm474, %v661, %v693
      %v726 = vsel %vm474, %v662, %v694
      %v727 = vsel %vm474, %v663, %v695
      %v728 = vsel %vm474, %v664, %v696
      %v729 = vsel %vm474, %v665, %v697
      %v730 = vsel %vm474, %v666, %v698
      %731 = vst [vmem:[%s172] sm:$0xff] %v699
      %732 = vst [vmem:[%s172 + $0x8] sm:$0xff] %v700
      %733 = vst [vmem:[%s172 + $0x10] sm:$0xff] %v701
      %734 = vst [vmem:[%s172 + $0x18] sm:$0xff] %v702
      %735 = vst [vmem:[%s172 + $0x20] sm:$0xff] %v703
      %736 = vst [vmem:[%s172 + $0x28] sm:$0xff] %v704
      %737 = vst [vmem:[%s172 + $0x30] sm:$0xff] %v705
      %738 = vst [vmem:[%s172 + $0x38] sm:$0xff] %v706
      %739 = vst [vmem:[%s172 + $0x40] sm:$0xff] %v707
      %740 = vst [vmem:[%s172 + $0x48] sm:$0xff] %v708
      %741 = vst [vmem:[%s172 + $0x50] sm:$0xff] %v709
      %742 = vst [vmem:[%s172 + $0x58] sm:$0xff] %v710
      %743 = vst [vmem:[%s172 + $0x60] sm:$0xff] %v711
      %744 = vst [vmem:[%s172 + $0x68] sm:$0xff] %v712
      %745 = vst [vmem:[%s172 + $0x70] sm:$0xff] %v713
      %746 = vst [vmem:[%s172 + $0x78] sm:$0xff] %v714
      %747 = vst [vmem:[%s172 + $0x80] sm:$0xff] %v715
      %748 = vst [vmem:[%s172 + $0x88] sm:$0xff] %v716
      %749 = vst [vmem:[%s172 + $0x90] sm:$0xff] %v717
      %750 = vst [vmem:[%s172 + $0x98] sm:$0xff] %v718
      %751 = vst [vmem:[%s172 + $0xa0] sm:$0xff] %v719
      %752 = vst [vmem:[%s172 + $0xa8] sm:$0xff] %v720
      %753 = vst [vmem:[%s172 + $0xb0] sm:$0xff] %v721
      %754 = vst [vmem:[%s172 + $0xb8] sm:$0xff] %v722
      %755 = vst [vmem:[%s172 + $0xc0] sm:$0xff] %v723
      %756 = vst [vmem:[%s172 + $0xc8] sm:$0xff] %v724
      %757 = vst [vmem:[%s172 + $0xd0] sm:$0xff] %v725
      %758 = vst [vmem:[%s172 + $0xd8] sm:$0xff] %v726
      %759 = vst [vmem:[%s172 + $0xe0] sm:$0xff] %v727
      %760 = vst [vmem:[%s172 + $0xe8] sm:$0xff] %v728
      %761 = vst [vmem:[%s172 + $0xf0] sm:$0xff] %v729
      %762 = vst [vmem:[%s172 + $0xf8] sm:$0xff] %v730
      %s763 = smul.u32 32, %s14
      %p764 = scmp.lt.s32.totalorder %s763, 63
      %s765 = scalar_select %p764, %s763, 63
      %s766 = smul.addr %s765, 8
      %s767 = scalar_lea.vmem %s3, %s766
      // Predicated region
      $region33: #{_forward.1} parent=31 // pred_check
        %p768 = pneg %p100
      $region34: #{_forward.1} parent=31 // pred_check_branch
        %770 = sbr.rel (%p768) target = $region36
      $region35: #{_forward.1} parent=31 // pred_region
        %s771 = smul.u32 32, %s14
      $region36: #{_forward.1} parent=31 // pred_fallthru
        _
    $region32: #{_forward.1} parent=5 // pred_fallthru
      _
    %p772 = scmp.le.s32.totalorder 2, %s9
    // Predicated region
    $region37: #{_forward.1} parent=5 // pred_check
      %p773 = pneg %p772
    $region38: #{_forward.1} parent=5 // pred_check_branch
      %775 = sbr.rel (%p773) target = $region40
    $region39: #{_forward.1} parent=5 // pred_region
      %s776 = ssub.s32 %s9, 2
      // Predicated region
      $region41: #{_forward.1} parent=39 // pred_check
        %p777 = pneg %p106
      $region42: #{_forward.1} parent=39 // pred_check_branch
        %779 = sbr.rel (%p777) target = $region44
      $region43: #{_forward.1} parent=39 // pred_region
        %s780 = smul.u32 32, %s15
        %p781 = scmp.lt.s32.totalorder %s780, 63
        %s782 = scalar_select %p781, %s780, 63
        %s783 = smul.addr %s782, 8
        %s784 = scalar_lea.vmem %s3, %s783
      $region44: #{_forward.1} parent=39 // pred_fallthru
        _
    $region40: #{_forward.1} parent=5 // pred_fallthru
      _
  $region6: #{_forward.1} parent=0 // loop_footer
    %s13 = sadd.s32 1, %s9
  $region7: #{_forward.1} parent=0 // loop_footer_branch
    %8 = sbr.rel target = $region3
  $region8: #{_forward.1} parent=0 // loop_exit
    _

</llo_original>
